<compile_context>
chip_gen: v5e
topology: v5e:2x2
jax: 0.10.0
libtpu: 0.0.40
codegen_flags: <defaults>
</compile_context>

<pallas_src>
import functools

import jax
import jax.numpy as jnp
from jax import lax
from jax.experimental import pallas as pl
from jax.experimental.pallas import tpu as pltpu

BN_EPS = 1e-5


# ------------------------------ Pallas kernel -------------------------------

def _bottleneck_kernel(x_ref, w1_ref, b1_ref, m1_ref, w2_ref, w3_ref, b3_ref,
                       wd_ref, bd_ref, out_ref, y1p_ref, *,
                       tap_offs, res_off, is_downsample):
    """Fused bottleneck for one (n, d) plane.  All slices are static.

    x_ref  : (Cin, Lx)   bf16  zero-padded plane, channels on sublanes, padded
                               spatial flattened on lanes (quadrant-reordered
                               for stride 2), plus zero guard columns.
    w1_ref : (mid, Cin)  bf16  conv1 weight * BN1 scale
    b1_ref : (mid, 1)    f32   BN1 bias
    m1_ref : (1, Lx)     f32   interior mask (1 inside the image, 0 on pads)
    w2_ref : (9,mid,mid) bf16  conv2 taps (t = kh*3+kw), BN2 scale folded
    w3_ref : (Cout, mid) bf16  conv3 weight * BN3 scale
    b3_ref : (Cout, 1)   f32   BN3 bias + W3f @ BN2 bias (conv2 bias folded)
    wd_ref : (Cout, Cin) bf16  downsample weight * BNd scale ((1,1) if identity)
    bd_ref : (Cout, 1)   f32   BNd bias ((1,1) dummy if identity)
    out_ref: (Cout, Ho*Wp) bf16 lane-dense output (Wp-pitch rows; wrapper drops
                                the Wp-Wo tail columns of each row)
    y1p_ref: (mid, Lx)   bf16  VMEM scratch: padded conv1+BN1 output
    """
    f32 = jnp.float32
    Lout = out_ref.shape[-1]                       # Ho * Wp

    # ---- conv1 (1x1x1) + BN1: one lane-dense GEMM over the whole plane -----
    # Bias is masked to the interior so padding positions stay exactly zero
    # (required by conv2's implicit zero padding).
    y1 = jnp.dot(w1_ref[...], x_ref[...], preferred_element_type=f32)
    y1p_ref[...] = (y1 + b1_ref[...] * m1_ref[...]).astype(y1p_ref.dtype)

    # ---- conv2 (1x3x3) + BN2 scale: 9 shifted whole-plane GEMMs ------------
    acc = None
    for t, off in enumerate(tap_offs):
        part = jnp.dot(w2_ref[t], y1p_ref[:, off:off + Lout],
                       preferred_element_type=f32)
        acc = part if acc is None else acc + part

    # ---- conv3 (1x1x1) + BN3 + ReLU -----------------------------------------
    y3 = jnp.dot(w3_ref[...], acc.astype(w3_ref.dtype),
                 preferred_element_type=f32) + b3_ref[...]
    y3 = jnp.maximum(y3, 0.0)

    # ---- residual: identity or downsample conv + BN + ReLU -----------------
    xs = x_ref[:, res_off:res_off + Lout]          # (Cin, Lout), static slice
    if is_downsample:
        res = jnp.maximum(
            jnp.dot(wd_ref[...], xs, preferred_element_type=f32) + bd_ref[...],
            0.0)
    else:
        res = xs.astype(f32)

    out_ref[...] = (y3 + res).astype(out_ref.dtype)


# ------------------------------ parameters ----------------------------------

def _bn_params(key, c):
    k1, k2, k3, k4 = jax.random.split(key, 4)
    return dict(
        gamma=1.0 + 0.1 * jax.random.normal(k1, (c,), jnp.float32),
        beta=0.1 * jax.random.normal(k2, (c,), jnp.float32),
        mean=0.1 * jax.random.normal(k3, (c,), jnp.float32),
        var=1.0 + 0.1 * jnp.abs(jax.random.normal(k4, (c,), jnp.float32)),
    )


def init_params(key, in_channels, out_channels):
    mid = out_channels // 4
    ks = jax.random.split(key, 8)

    def conv_w(k, co, ci, kd, kh, kw):
        return 0.1 * jax.random.normal(k, (co, ci, kd, kh, kw), jnp.float32)

    return dict(
        w1=conv_w(ks[0], mid, in_channels, 1, 1, 1), bn1=_bn_params(ks[1], mid),
        w2=conv_w(ks[2], mid, mid, 1, 3, 3),         bn2=_bn_params(ks[3], mid),
        w3=conv_w(ks[4], out_channels, mid, 1, 1, 1), bn3=_bn_params(ks[5], out_channels),
        wd=conv_w(ks[6], out_channels, in_channels, 1, 1, 1), bnd=_bn_params(ks[7], out_channels),
    )


def _bn_fold(bn):
    s = bn["gamma"] / jnp.sqrt(bn["var"] + BN_EPS)
    b = bn["beta"] - bn["mean"] * s
    return s, b


# ------------------------------ forward pass ---------------------------------

def bottleneck_forward(x_ncdhw, params, *, is_half, in_channels, out_channels):
    N, C, D, H, W = x_ncdhw.shape
    assert C == in_channels
    mid = out_channels // 4
    s = 2 if is_half else 1
    Ho = (H - 1) // s + 1
    Wo = (W - 1) // s + 1
    Hp, Wp = H + 2, W + 2
    NS = N * D
    is_downsample = (in_channels != out_channels) or is_half

    # --- activations: NCDHW -> (N*D, C, Hp, Wp), zero padded; channels on
    #     sublanes, flattened padded plane on lanes.
    xp = jnp.transpose(x_ncdhw, (0, 2, 1, 3, 4)).reshape(NS, C, H, W)
    xp = jnp.pad(xp, ((0, 0), (0, 0), (1, 1), (1, 1)))
    m1 = jnp.pad(jnp.ones((H, W), jnp.float32), ((1, 1), (1, 1)))

    if s == 2:
        # Quadrant reorder (even rows/cols first, then odd) so every stride-2
        # 3x3 tap and the downsample read are contiguous static lane slices.
        def reorder(a):
            a = jnp.concatenate([a[..., 0::2, :], a[..., 1::2, :]], axis=-2)
            return jnp.concatenate([a[..., :, 0::2], a[..., :, 1::2]], axis=-1)
        xp, m1 = reorder(xp), reorder(m1)
        Re, E = (Hp + 1) // 2, (Wp + 1) // 2
        rowoff, coloff = (0, Re, 1), (0, E, 1)
        res_off = Re * Wp + E                      # x(2ho, 2wo)
    else:
        rowoff, coloff = (0, 1, 2), (0, 1, 2)
        res_off = Wp + 1                           # x(ho, wo)

    # tap t = kh*3 + kw reads y1p at flat offset (output index + tap_offs[t])
    tap_offs = tuple(rowoff[kh] * Wp + coloff[kw]
                     for kh in range(3) for kw in range(3))
    Lout = Ho * Wp
    # zero guard columns so all static slices stay inside the allocation
    guard = max(0, max(max(tap_offs), res_off) + Lout - Hp * Wp)

    xp = xp.reshape(NS, C, Hp * Wp)
    m1 = m1.reshape(1, Hp * Wp)
    if guard:
        xp = jnp.pad(xp, ((0, 0), (0, 0), (0, guard)))
        m1 = jnp.pad(m1, ((0, 0), (0, guard)))
    Lx = Hp * Wp + guard
    xp = xp.astype(jnp.bfloat16)

    # --- fold BN (eval mode) into weights / biases
    s1, b1 = _bn_fold(params["bn1"])
    s2, b2 = _bn_fold(params["bn2"])
    s3, b3 = _bn_fold(params["bn3"])

    w1 = (params["w1"].reshape(mid, in_channels) * s1[:, None]).astype(jnp.bfloat16)
    b1c = b1.reshape(mid, 1).astype(jnp.float32)
    w2 = jnp.transpose(params["w2"][:, :, 0, :, :], (2, 3, 0, 1)).reshape(9, mid, mid)
    w2 = (w2 * s2[None, :, None]).astype(jnp.bfloat16)
    w3f = params["w3"].reshape(out_channels, mid) * s3[:, None]
    b3p = (b3 + w3f @ b2).reshape(out_channels, 1).astype(jnp.float32)
    w3 = w3f.astype(jnp.bfloat16)

    if is_downsample:
        sd, bd = _bn_fold(params["bnd"])
        wd = (params["wd"].reshape(out_channels, in_channels)
              * sd[:, None]).astype(jnp.bfloat16)
        bdc = bd.reshape(out_channels, 1).astype(jnp.float32)
    else:
        wd = jnp.zeros((1, 1), jnp.bfloat16)       # dummies, never read
        bdc = jnp.zeros((1, 1), jnp.float32)

    kernel = functools.partial(
        _bottleneck_kernel, tap_offs=tap_offs, res_off=res_off,
        is_downsample=is_downsample)

    out = pl.pallas_call(
        kernel,
        out_shape=jax.ShapeDtypeStruct((NS, out_channels, Lout), jnp.bfloat16),
        grid_spec=pltpu.PrefetchScalarGridSpec(
            num_scalar_prefetch=0,
            grid=(NS,),
            in_specs=[
                pl.BlockSpec((None, C, Lx), lambda i: (i, 0, 0)),
                pl.BlockSpec((mid, in_channels), lambda i: (0, 0)),
                pl.BlockSpec((mid, 1), lambda i: (0, 0)),
                pl.BlockSpec((1, Lx), lambda i: (0, 0)),
                pl.BlockSpec((9, mid, mid), lambda i: (0, 0, 0)),
                pl.BlockSpec((out_channels, mid), lambda i: (0, 0)),
                pl.BlockSpec((out_channels, 1), lambda i: (0, 0)),
                pl.BlockSpec(wd.shape, lambda i: (0, 0)),
                pl.BlockSpec(bdc.shape, lambda i: (0, 0)),
            ],
            out_specs=pl.BlockSpec((None, out_channels, Lout),
                                   lambda i: (i, 0, 0)),
            scratch_shapes=[pltpu.VMEM((mid, Lx), jnp.bfloat16)],
        ),
        compiler_params=pltpu.CompilerParams(
            dimension_semantics=("parallel",),
            vmem_limit_bytes=64 * 1024 * 1024),
    )(xp, w1, b1c, m1, w2, w3, b3p, wd, bdc)

    # (NS, Cout, Ho*Wp) -> NCDHW, dropping the Wp-Wo garbage columns per row.
    out = out.reshape(N, D, out_channels, Ho, Wp)[..., :Wo]
    return jnp.transpose(out, (0, 2, 1, 3, 4))


# ---------------------------- pure-JAX reference -----------------------------

def reference_forward(x, params, *, is_half, in_channels, out_channels):
    def conv_bn(x, w, bn, stride, pad, relu):
        y = lax.conv_general_dilated(
            x, w, window_strides=stride, padding=[(p, p) for p in pad],
            dimension_numbers=("NCDHW", "OIDHW", "NCDHW"))
        s = bn["gamma"] / jnp.sqrt(bn["var"] + BN_EPS)
        b = bn["beta"] - bn["mean"] * s
        y = y * s[None, :, None, None, None] + b[None, :, None, None, None]
        if relu:
            y = jnp.maximum(y, 0.0)
        return y

    s_mid = (1, 2, 2) if is_half else (1, 1, 1)
    y = conv_bn(x, params["w1"], params["bn1"], (1, 1, 1), (0, 0, 0), False)
    y = conv_bn(y, params["w2"], params["bn2"], s_mid, (0, 1, 1), False)
    y = conv_bn(y, params["w3"], params["bn3"], (1, 1, 1), (0, 0, 0), True)
    if (in_channels != out_channels) or is_half:
        res = conv_bn(x, params["wd"], params["bnd"], s_mid, (0, 0, 0), True)
    else:
        res = x
    return res + y


# ----------------------------------- main ------------------------------------

def _check(key, *, N, D, H, W, in_c, out_c, is_half):
    kx, kp = jax.random.split(key)
    x = jax.random.normal(kx, (N, in_c, D, H, W), jnp.float32)
    params = init_params(kp, in_c, out_c)
    out = bottleneck_forward(x, params, is_half=is_half,
                             in_channels=in_c, out_channels=out_c)
    out = jax.block_until_ready(out)
    ref = reference_forward(x, params, is_half=is_half,
                            in_channels=in_c, out_channels=out_c)
    assert out.shape == ref.shape, (out.shape, ref.shape)
    outf = out.astype(jnp.float32)
    # bf16 MXU inputs + bf16 output -> relaxed tolerance vs the f32 reference.
    assert jnp.allclose(outf, ref, atol=5e-2, rtol=5e-2), float(
        jnp.max(jnp.abs(outf - ref)))


if __name__ == "__main__":
    key = jax.random.PRNGKey(0)
    k1, k2, k3 = jax.random.split(key, 3)
    # stride-2 bottleneck with downsample branch (main config)
    _check(k1, N=2, D=4, H=8, W=8, in_c=8, out_c=16, is_half=True)
    # identity residual (no downsample), stride 1
    _check(k2, N=2, D=4, H=8, W=8, in_c=16, out_c=16, is_half=False)
    # ragged spatial sizes (no divisibility requirements)
    _check(k3, N=1, D=3, H=7, W=9, in_c=8, out_c=16, is_half=True)
    print("KERNEL_OK")
</pallas_src>

<mosaic_0001>
module attributes {stable_mosaic.version = 11 : i64} {
  func.func @_bottleneck_kernel(%arg0: i32, %arg1: memref<1x8x100xbf16, #tpu.memory_space<vmem>>, %arg2: memref<4x8xbf16, #tpu.memory_space<vmem>>, %arg3: memref<4x1xf32, #tpu.memory_space<vmem>>, %arg4: memref<1x100xf32, #tpu.memory_space<vmem>>, %arg5: memref<9x4x4xbf16, #tpu.memory_space<vmem>>, %arg6: memref<16x4xbf16, #tpu.memory_space<vmem>>, %arg7: memref<16x1xf32, #tpu.memory_space<vmem>>, %arg8: memref<16x8xbf16, #tpu.memory_space<vmem>>, %arg9: memref<16x1xf32, #tpu.memory_space<vmem>>, %arg10: memref<1x16x40xbf16, #tpu.memory_space<vmem>>, %arg11: memref<4x100xbf16, #tpu.memory_space<vmem>>) attributes {dimension_semantics = [#tpu.dimension_semantics<parallel>], iteration_bounds = array<i64: 8>, scalar_prefetch = 0 : i64, scratch_operands = 1 : i64, tpu.core_type = #tpu.core_type<tc>, window_params = [{transform_indices = @transform_0, window_bounds = array<i64: 1, 8, 100>}, {pipeline_mode = #tpu.pipeline_mode<synchronous>, transform_indices = @transform_1, window_bounds = array<i64: 4, 8>}, {pipeline_mode = #tpu.pipeline_mode<synchronous>, transform_indices = @transform_2, window_bounds = array<i64: 4, 1>}, {pipeline_mode = #tpu.pipeline_mode<synchronous>, transform_indices = @transform_3, window_bounds = array<i64: 1, 100>}, {pipeline_mode = #tpu.pipeline_mode<synchronous>, transform_indices = @transform_4, window_bounds = array<i64: 9, 4, 4>}, {pipeline_mode = #tpu.pipeline_mode<synchronous>, transform_indices = @transform_5, window_bounds = array<i64: 16, 4>}, {pipeline_mode = #tpu.pipeline_mode<synchronous>, transform_indices = @transform_6, window_bounds = array<i64: 16, 1>}, {pipeline_mode = #tpu.pipeline_mode<synchronous>, transform_indices = @transform_7, window_bounds = array<i64: 16, 8>}, {pipeline_mode = #tpu.pipeline_mode<synchronous>, transform_indices = @transform_8, window_bounds = array<i64: 16, 1>}, {transform_indices = @transform_9, window_bounds = array<i64: 1, 16, 40>}]} {
    %c0 = arith.constant 0 : index
    %c0_0 = arith.constant 0 : index
    %0 = vector.load %arg2[%c0, %c0_0] : memref<4x8xbf16, #tpu.memory_space<vmem>>, vector<4x8xbf16>
    %c0_1 = arith.constant 0 : index
    %c0_2 = arith.constant 0 : index
    %c0_3 = arith.constant 0 : index
    %1 = vector.load %arg1[%c0_1, %c0_2, %c0_3] : memref<1x8x100xbf16, #tpu.memory_space<vmem>>, vector<1x8x100xbf16>
    %2 = vector.shape_cast %1 : vector<1x8x100xbf16> to vector<8x100xbf16>
    %cst = arith.constant dense<0.000000e+00> : vector<4x100xf32>
    %3 = tpu.matmul %0, %2, %cst {dimension_numbers = #tpu.dot_dimension_numbers<[1], [0], [0], [1], [0, 0, 1, 1], [], []>} : vector<4x8xbf16>, vector<8x100xbf16>, vector<4x100xf32> -> vector<4x100xf32>
    %c0_4 = arith.constant 0 : index
    %c0_5 = arith.constant 0 : index
    %4 = vector.load %arg3[%c0_4, %c0_5] : memref<4x1xf32, #tpu.memory_space<vmem>>, vector<4x1xf32>
    %c0_6 = arith.constant 0 : index
    %c0_7 = arith.constant 0 : index
    %5 = vector.load %arg4[%c0_6, %c0_7] : memref<1x100xf32, #tpu.memory_space<vmem>>, vector<1x100xf32>
    %6 = vector.broadcast %4 : vector<4x1xf32> to vector<4x100xf32>
    %7 = vector.broadcast %5 : vector<1x100xf32> to vector<4x100xf32>
    %8 = arith.mulf %6, %7 : vector<4x100xf32>
    %9 = arith.addf %3, %8 : vector<4x100xf32>
    %10 = arith.truncf %9 : vector<4x100xf32> to vector<4x100xbf16>
    %c0_8 = arith.constant 0 : index
    %c0_9 = arith.constant 0 : index
    %11 = vector.load %arg11[%c0_8, %c0_9] : memref<4x100xbf16, #tpu.memory_space<vmem>>, vector<4x100xbf16>
    tpu.vector_store %arg11[%c0_8, %c0_9], %10 {strides = array<i32>} : memref<4x100xbf16, #tpu.memory_space<vmem>>, vector<4x100xbf16>,
    %c0_10 = arith.constant 0 : index
    %c0_11 = arith.constant 0 : index
    %c0_12 = arith.constant 0 : index
    %12 = vector.load %arg5[%c0_10, %c0_11, %c0_12] : memref<9x4x4xbf16, #tpu.memory_space<vmem>>, vector<1x4x4xbf16>
    %13 = vector.shape_cast %12 : vector<1x4x4xbf16> to vector<4x4xbf16>
    %c0_13 = arith.constant 0 : index
    %c0_14 = arith.constant 0 : index
    %14 = vector.load %arg11[%c0_13, %c0_14] : memref<4x100xbf16, #tpu.memory_space<vmem>>, vector<4x40xbf16>
    %cst_15 = arith.constant dense<0.000000e+00> : vector<4x40xf32>
    %15 = tpu.matmul %13, %14, %cst_15 {dimension_numbers = #tpu.dot_dimension_numbers<[1], [0], [0], [1], [0, 0, 1, 1], [], []>} : vector<4x4xbf16>, vector<4x40xbf16>, vector<4x40xf32> -> vector<4x40xf32>
    %c1 = arith.constant 1 : index
    %c0_16 = arith.constant 0 : index
    %c0_17 = arith.constant 0 : index
    %16 = vector.load %arg5[%c1, %c0_16, %c0_17] : memref<9x4x4xbf16, #tpu.memory_space<vmem>>, vector<1x4x4xbf16>
    %17 = vector.shape_cast %16 : vector<1x4x4xbf16> to vector<4x4xbf16>
    %c0_18 = arith.constant 0 : index
    %c5 = arith.constant 5 : index
    %18 = vector.load %arg11[%c0_18, %c5] : memref<4x100xbf16, #tpu.memory_space<vmem>>, vector<4x40xbf16>
    %cst_19 = arith.constant dense<0.000000e+00> : vector<4x40xf32>
    %19 = tpu.matmul %17, %18, %cst_19 {dimension_numbers = #tpu.dot_dimension_numbers<[1], [0], [0], [1], [0, 0, 1, 1], [], []>} : vector<4x4xbf16>, vector<4x40xbf16>, vector<4x40xf32> -> vector<4x40xf32>
    %20 = arith.addf %15, %19 : vector<4x40xf32>
    %c2 = arith.constant 2 : index
    %c0_20 = arith.constant 0 : index
    %c0_21 = arith.constant 0 : index
    %21 = vector.load %arg5[%c2, %c0_20, %c0_21] : memref<9x4x4xbf16, #tpu.memory_space<vmem>>, vector<1x4x4xbf16>
    %22 = vector.shape_cast %21 : vector<1x4x4xbf16> to vector<4x4xbf16>
    %c0_22 = arith.constant 0 : index
    %c1_23 = arith.constant 1 : index
    %23 = vector.load %arg11[%c0_22, %c1_23] : memref<4x100xbf16, #tpu.memory_space<vmem>>, vector<4x40xbf16>
    %cst_24 = arith.constant dense<0.000000e+00> : vector<4x40xf32>
    %24 = tpu.matmul %22, %23, %cst_24 {dimension_numbers = #tpu.dot_dimension_numbers<[1], [0], [0], [1], [0, 0, 1, 1], [], []>} : vector<4x4xbf16>, vector<4x40xbf16>, vector<4x40xf32> -> vector<4x40xf32>
    %25 = arith.addf %20, %24 : vector<4x40xf32>
    %c3 = arith.constant 3 : index
    %c0_25 = arith.constant 0 : index
    %c0_26 = arith.constant 0 : index
    %26 = vector.load %arg5[%c3, %c0_25, %c0_26] : memref<9x4x4xbf16, #tpu.memory_space<vmem>>, vector<1x4x4xbf16>
    %27 = vector.shape_cast %26 : vector<1x4x4xbf16> to vector<4x4xbf16>
    %c0_27 = arith.constant 0 : index
    %c50 = arith.constant 50 : index
    %28 = vector.load %arg11[%c0_27, %c50] : memref<4x100xbf16, #tpu.memory_space<vmem>>, vector<4x40xbf16>
    %cst_28 = arith.constant dense<0.000000e+00> : vector<4x40xf32>
    %29 = tpu.matmul %27, %28, %cst_28 {dimension_numbers = #tpu.dot_dimension_numbers<[1], [0], [0], [1], [0, 0, 1, 1], [], []>} : vector<4x4xbf16>, vector<4x40xbf16>, vector<4x40xf32> -> vector<4x40xf32>
    %30 = arith.addf %25, %29 : vector<4x40xf32>
    %c4 = arith.constant 4 : index
    %c0_29 = arith.constant 0 : index
    %c0_30 = arith.constant 0 : index
    %31 = vector.load %arg5[%c4, %c0_29, %c0_30] : memref<9x4x4xbf16, #tpu.memory_space<vmem>>, vector<1x4x4xbf16>
    %32 = vector.shape_cast %31 : vector<1x4x4xbf16> to vector<4x4xbf16>
    %c0_31 = arith.constant 0 : index
    %c55 = arith.constant 55 : index
    %33 = vector.load %arg11[%c0_31, %c55] : memref<4x100xbf16, #tpu.memory_space<vmem>>, vector<4x40xbf16>
    %cst_32 = arith.constant dense<0.000000e+00> : vector<4x40xf32>
    %34 = tpu.matmul %32, %33, %cst_32 {dimension_numbers = #tpu.dot_dimension_numbers<[1], [0], [0], [1], [0, 0, 1, 1], [], []>} : vector<4x4xbf16>, vector<4x40xbf16>, vector<4x40xf32> -> vector<4x40xf32>
    %35 = arith.addf %30, %34 : vector<4x40xf32>
    %c5_33 = arith.constant 5 : index
    %c0_34 = arith.constant 0 : index
    %c0_35 = arith.constant 0 : index
    %36 = vector.load %arg5[%c5_33, %c0_34, %c0_35] : memref<9x4x4xbf16, #tpu.memory_space<vmem>>, vector<1x4x4xbf16>
    %37 = vector.shape_cast %36 : vector<1x4x4xbf16> to vector<4x4xbf16>
    %c0_36 = arith.constant 0 : index
    %c51 = arith.constant 51 : index
    %38 = vector.load %arg11[%c0_36, %c51] : memref<4x100xbf16, #tpu.memory_space<vmem>>, vector<4x40xbf16>
    %cst_37 = arith.constant dense<0.000000e+00> : vector<4x40xf32>
    %39 = tpu.matmul %37, %38, %cst_37 {dimension_numbers = #tpu.dot_dimension_numbers<[1], [0], [0], [1], [0, 0, 1, 1], [], []>} : vector<4x4xbf16>, vector<4x40xbf16>, vector<4x40xf32> -> vector<4x40xf32>
    %40 = arith.addf %35, %39 : vector<4x40xf32>
    %c6 = arith.constant 6 : index
    %c0_38 = arith.constant 0 : index
    %c0_39 = arith.constant 0 : index
    %41 = vector.load %arg5[%c6, %c0_38, %c0_39] : memref<9x4x4xbf16, #tpu.memory_space<vmem>>, vector<1x4x4xbf16>
    %42 = vector.shape_cast %41 : vector<1x4x4xbf16> to vector<4x4xbf16>
    %c0_40 = arith.constant 0 : index
    %c10 = arith.constant 10 : index
    %43 = vector.load %arg11[%c0_40, %c10] : memref<4x100xbf16, #tpu.memory_space<vmem>>, vector<4x40xbf16>
    %cst_41 = arith.constant dense<0.000000e+00> : vector<4x40xf32>
    %44 = tpu.matmul %42, %43, %cst_41 {dimension_numbers = #tpu.dot_dimension_numbers<[1], [0], [0], [1], [0, 0, 1, 1], [], []>} : vector<4x4xbf16>, vector<4x40xbf16>, vector<4x40xf32> -> vector<4x40xf32>
    %45 = arith.addf %40, %44 : vector<4x40xf32>
    %c7 = arith.constant 7 : index
    %c0_42 = arith.constant 0 : index
    %c0_43 = arith.constant 0 : index
    %46 = vector.load %arg5[%c7, %c0_42, %c0_43] : memref<9x4x4xbf16, #tpu.memory_space<vmem>>, vector<1x4x4xbf16>
    %47 = vector.shape_cast %46 : vector<1x4x4xbf16> to vector<4x4xbf16>
    %c0_44 = arith.constant 0 : index
    %c15 = arith.constant 15 : index
    %48 = vector.load %arg11[%c0_44, %c15] : memref<4x100xbf16, #tpu.memory_space<vmem>>, vector<4x40xbf16>
    %cst_45 = arith.constant dense<0.000000e+00> : vector<4x40xf32>
    %49 = tpu.matmul %47, %48, %cst_45 {dimension_numbers = #tpu.dot_dimension_numbers<[1], [0], [0], [1], [0, 0, 1, 1], [], []>} : vector<4x4xbf16>, vector<4x40xbf16>, vector<4x40xf32> -> vector<4x40xf32>
    %50 = arith.addf %45, %49 : vector<4x40xf32>
    %c8 = arith.constant 8 : index
    %c0_46 = arith.constant 0 : index
    %c0_47 = arith.constant 0 : index
    %51 = vector.load %arg5[%c8, %c0_46, %c0_47] : memref<9x4x4xbf16, #tpu.memory_space<vmem>>, vector<1x4x4xbf16>
    %52 = vector.shape_cast %51 : vector<1x4x4xbf16> to vector<4x4xbf16>
    %c0_48 = arith.constant 0 : index
    %c11 = arith.constant 11 : index
    %53 = vector.load %arg11[%c0_48, %c11] : memref<4x100xbf16, #tpu.memory_space<vmem>>, vector<4x40xbf16>
    %cst_49 = arith.constant dense<0.000000e+00> : vector<4x40xf32>
    %54 = tpu.matmul %52, %53, %cst_49 {dimension_numbers = #tpu.dot_dimension_numbers<[1], [0], [0], [1], [0, 0, 1, 1], [], []>} : vector<4x4xbf16>, vector<4x40xbf16>, vector<4x40xf32> -> vector<4x40xf32>
    %55 = arith.addf %50, %54 : vector<4x40xf32>
    %c0_50 = arith.constant 0 : index
    %c0_51 = arith.constant 0 : index
    %56 = vector.load %arg6[%c0_50, %c0_51] : memref<16x4xbf16, #tpu.memory_space<vmem>>, vector<16x4xbf16>
    %57 = arith.truncf %55 : vector<4x40xf32> to vector<4x40xbf16>
    %cst_52 = arith.constant dense<0.000000e+00> : vector<16x40xf32>
    %58 = tpu.matmul %56, %57, %cst_52 {dimension_numbers = #tpu.dot_dimension_numbers<[1], [0], [0], [1], [0, 0, 1, 1], [], []>} : vector<16x4xbf16>, vector<4x40xbf16>, vector<16x40xf32> -> vector<16x40xf32>
    %c0_53 = arith.constant 0 : index
    %c0_54 = arith.constant 0 : index
    %59 = vector.load %arg7[%c0_53, %c0_54] : memref<16x1xf32, #tpu.memory_space<vmem>>, vector<16x1xf32>
    %60 = vector.broadcast %59 : vector<16x1xf32> to vector<16x40xf32>
    %61 = arith.addf %58, %60 : vector<16x40xf32>
    %cst_55 = arith.constant 0.000000e+00 : f32
    %62 = vector.broadcast %cst_55 : f32 to vector<16x40xf32>
    %63 = arith.maximumf %61, %62 : vector<16x40xf32>
    %c0_56 = arith.constant 0 : index
    %c0_57 = arith.constant 0 : index
    %c55_58 = arith.constant 55 : index
    %64 = vector.load %arg1[%c0_56, %c0_57, %c55_58] : memref<1x8x100xbf16, #tpu.memory_space<vmem>>, vector<1x8x40xbf16>
    %65 = vector.shape_cast %64 : vector<1x8x40xbf16> to vector<8x40xbf16>
    %c0_59 = arith.constant 0 : index
    %c0_60 = arith.constant 0 : index
    %66 = vector.load %arg8[%c0_59, %c0_60] : memref<16x8xbf16, #tpu.memory_space<vmem>>, vector<16x8xbf16>
    %cst_61 = arith.constant dense<0.000000e+00> : vector<16x40xf32>
    %67 = tpu.matmul %66, %65, %cst_61 {dimension_numbers = #tpu.dot_dimension_numbers<[1], [0], [0], [1], [0, 0, 1, 1], [], []>} : vector<16x8xbf16>, vector<8x40xbf16>, vector<16x40xf32> -> vector<16x40xf32>
    %c0_62 = arith.constant 0 : index
    %c0_63 = arith.constant 0 : index
    %68 = vector.load %arg9[%c0_62, %c0_63] : memref<16x1xf32, #tpu.memory_space<vmem>>, vector<16x1xf32>
    %69 = vector.broadcast %68 : vector<16x1xf32> to vector<16x40xf32>
    %70 = arith.addf %67, %69 : vector<16x40xf32>
    %cst_64 = arith.constant 0.000000e+00 : f32
    %71 = vector.broadcast %cst_64 : f32 to vector<16x40xf32>
    %72 = arith.maximumf %70, %71 : vector<16x40xf32>
    %73 = arith.addf %63, %72 : vector<16x40xf32>
    %74 = arith.truncf %73 : vector<16x40xf32> to vector<16x40xbf16>
    %c0_65 = arith.constant 0 : index
    %c0_66 = arith.constant 0 : index
    %c0_67 = arith.constant 0 : index
    %75 = vector.load %arg10[%c0_65, %c0_66, %c0_67] : memref<1x16x40xbf16, #tpu.memory_space<vmem>>, vector<1x16x40xbf16>
    %76 = vector.shape_cast %75 : vector<1x16x40xbf16> to vector<16x40xbf16>
    %77 = vector.shape_cast %74 : vector<16x40xbf16> to vector<1x16x40xbf16>
    tpu.vector_store %arg10[%c0_65, %c0_66, %c0_67], %77 {strides = array<i32>} : memref<1x16x40xbf16, #tpu.memory_space<vmem>>, vector<1x16x40xbf16>,
    return
  }
  func.func @transform_0(%arg0: i32) -> (i32, i32, i32) {
    %c0_i32 = arith.constant 0 : i32
    %c0_i32_0 = arith.constant 0 : i32
    %c0_i32_1 = arith.constant 0 : i32
    return %arg0, %c0_i32, %c0_i32_0 : i32, i32, i32
  }
  func.func @transform_1(%arg0: i32) -> (i32, i32) {
    %c0_i32 = arith.constant 0 : i32
    %c0_i32_0 = arith.constant 0 : i32
    %c0_i32_1 = arith.constant 0 : i32
    return %c0_i32, %c0_i32_0 : i32, i32
  }
  func.func @transform_2(%arg0: i32) -> (i32, i32) {
    %c0_i32 = arith.constant 0 : i32
    %c0_i32_0 = arith.constant 0 : i32
    %c0_i32_1 = arith.constant 0 : i32
    return %c0_i32, %c0_i32_0 : i32, i32
  }
  func.func @transform_3(%arg0: i32) -> (i32, i32) {
    %c0_i32 = arith.constant 0 : i32
    %c0_i32_0 = arith.constant 0 : i32
    %c0_i32_1 = arith.constant 0 : i32
    return %c0_i32, %c0_i32_0 : i32, i32
  }
  func.func @transform_4(%arg0: i32) -> (i32, i32, i32) {
    %c0_i32 = arith.constant 0 : i32
    %c0_i32_0 = arith.constant 0 : i32
    %c0_i32_1 = arith.constant 0 : i32
    %c0_i32_2 = arith.constant 0 : i32
    return %c0_i32, %c0_i32_0, %c0_i32_1 : i32, i32, i32
  }
  func.func @transform_5(%arg0: i32) -> (i32, i32) {
    %c0_i32 = arith.constant 0 : i32
    %c0_i32_0 = arith.constant 0 : i32
    %c0_i32_1 = arith.constant 0 : i32
    return %c0_i32, %c0_i32_0 : i32, i32
  }
  func.func @transform_6(%arg0: i32) -> (i32, i32) {
    %c0_i32 = arith.constant 0 : i32
    %c0_i32_0 = arith.constant 0 : i32
    %c0_i32_1 = arith.constant 0 : i32
    return %c0_i32, %c0_i32_0 : i32, i32
  }
  func.func @transform_7(%arg0: i32) -> (i32, i32) {
    %c0_i32 = arith.constant 0 : i32
    %c0_i32_0 = arith.constant 0 : i32
    %c0_i32_1 = arith.constant 0 : i32
    return %c0_i32, %c0_i32_0 : i32, i32
  }
  func.func @transform_8(%arg0: i32) -> (i32, i32) {
    %c0_i32 = arith.constant 0 : i32
    %c0_i32_0 = arith.constant 0 : i32
    %c0_i32_1 = arith.constant 0 : i32
    return %c0_i32, %c0_i32_0 : i32, i32
  }
  func.func @transform_9(%arg0: i32) -> (i32, i32, i32) {
    %c0_i32 = arith.constant 0 : i32
    %c0_i32_0 = arith.constant 0 : i32
    %c0_i32_1 = arith.constant 0 : i32
    return %arg0, %c0_i32, %c0_i32_0 : i32, i32, i32
  }
}

</mosaic_0001>

<llo_original>
// kernel: tpu_custom_call.1
$region0: #{tpu_custom_call.1}
  #allocation0 [shape = 'u32[]', space=smem, size = 0x4, offset = 0x4, fixed_abs, tag = 'smem constant byte address 0x4 - core index']
  #allocation1 [shape = 'u32[72,128]{1,0:T(1,128)}', space=vmem, size = 0x9000, scoped, tag = 'internal scratch']
  #allocation2 [shape = 'bf16[4,100]{1,0:T(4,128)(2,1)}', space=vmem, size = 0x400, scoped, tag = 'scratch operand']
  %s0 = inlined_call_operand.vmem [shape: bf16[8,8,100], index: 0, kind: input, shape index: {}]
  %s1 = inlined_call_operand.vmem [shape: bf16[4,8], index: 1, kind: input, shape index: {}]
  %s2 = inlined_call_operand.vmem [shape: f32[4,1], index: 2, kind: input, shape index: {}]
  %s3 = inlined_call_operand.vmem [shape: f32[1,100], index: 3, kind: input, shape index: {}]
  %s4 = inlined_call_operand.vmem [shape: bf16[9,4,4], index: 4, kind: input, shape index: {}]
  %s5 = inlined_call_operand.vmem [shape: bf16[16,4], index: 5, kind: input, shape index: {}]
  %s6 = inlined_call_operand.vmem [shape: f32[16,1], index: 6, kind: input, shape index: {}]
  %s7 = inlined_call_operand.vmem [shape: bf16[16,8], index: 7, kind: input, shape index: {}]
  %s8 = inlined_call_operand.vmem [shape: f32[16,1], index: 8, kind: input, shape index: {}]
  %s9 = inlined_call_operand.hbm [shape: bf16[8,16,40], index: 9, kind: output, shape index: {}]
  %s10 = sld [smem:[#allocation0]]
  $region69: #{tpu_custom_call.1} parent=0
    _
  %s12 = ssub.s32 1, %s10
  %s13 = scalar_select 0, %s12, %s10
  $region1: #{tpu_custom_call.1} parent=0
    #allocation3 [shape = 'u8[8192]{0}', space=vmem, size = 0x2000, scoped, tag = 'output window, operand 0']
    #allocation4 [shape = 's32[2]{0}', space=sflag, size = 0x8, scoped, tag = 'scoped memory for tpu_custom_call.1']
    %14 = vsyncpa [#allocation4], 0
    %s15 = scalar_lea.sflag [#allocation4], 1
    %16 = vsyncpa %s15, 0
    loop: start=0, step=1, limit=10
    $region2: #{tpu_custom_call.1} parent=1 // loop_pre_header
      _
    $region3: #{tpu_custom_call.1} parent=1 // loop_header
      %s18 = sphi 0, %s22
      %p19 = scmp.ge.s32.totalorder %s18, 10
      %s28 = sphi 0, %s30
      %s31 = sphi 0, %s28
      %s32 = sphi 0, %s31
      %s48 = sphi 0, %s32
      %s52 = sphi 0, %s52
      %s54 = sphi 0, %s52
      %s55 = sphi 0, %s54
      %s69 = sphi 0, %s55
      %s73 = sphi 0, %s73
      %s75 = sphi 0, %s73
      %s76 = sphi 0, %s75
      %s90 = sphi 0, %s76
      %s94 = sphi 0, %s94
      %s96 = sphi 0, %s94
      %s97 = sphi 0, %s96
      %s111 = sphi 0, %s97
      %s115 = sphi 0, %s115
      %s117 = sphi 0, %s115
      %s118 = sphi 0, %s117
      %s132 = sphi 0, %s118
      %s136 = sphi 0, %s136
      %s138 = sphi 0, %s136
      %s139 = sphi 0, %s138
      %s153 = sphi 0, %s139
      %s157 = sphi 0, %s157
      %s159 = sphi 0, %s157
      %s160 = sphi 0, %s159
      %s174 = sphi 0, %s160
      %s178 = sphi 0, %s178
      %s180 = sphi 0, %s178
      %s181 = sphi 0, %s180
      %s195 = sphi 0, %s181
      %s199 = sphi 0, %s199
      %s201 = sphi 0, %s199
      %s202 = sphi 0, %s201
      %s216 = sphi 0, %s202
      %s222 = sphi 0, %s224
      %s225 = sphi 0, %s222
      %s226 = sphi 0, %s225
      %s242 = sphi 0, %s226
    $region4: #{tpu_custom_call.1} parent=1 // loop_header_branch
      %21 = sbr.rel (%p19) target = $region8
    $region5: #{tpu_custom_call.1} parent=1 // loop_body
      %s23 = ssub.s32 %s18, 1
      %s24 = ssub.s32 %s18, 2
      %s25 = sadd.s32 %s18, 1
      %s26 = ssub.s32 %s18, %s25
      %p27 = scmp.eq.s32.totalorder %s26, 0
      %s29 = sadd.s32 %s28, 1
      %s30 = scalar_select %p27, %s28, %s29
      %p33 = pneg %p27
      %p34 = scmp.eq.s32.totalorder %s18, 7
      %p35 = por %p33, %p34
      %p36 = scmp.ne.s32.totalorder %s28, %s31
      %p37 = scmp.eq.s32.totalorder %s18, 0
      %p38 = por %p36, %p37
      %p39 = scmp.ne.s32.totalorder %s28, %s31
      %p40 = scmp.eq.s32.totalorder %s23, 7
      %p41 = por %p39, %p40
      %p42 = scmp.ne.s32.totalorder %s31, %s32
      %p43 = scmp.eq.s32.totalorder %s23, 0
      %p44 = por %p42, %p43
      %p45 = scmp.ne.s32.totalorder %s31, %s32
      %p46 = scmp.eq.s32.totalorder %s24, 7
      %p47 = por %p45, %p46
      %p49 = scmp.ne.s32.totalorder %s32, %s48
      %p50 = scmp.eq.s32.totalorder %s24, 0
      %p51 = por %p49, %p50
      %s53 = sadd.s32 %s52, 1
      %p56 = scmp.eq.s32.totalorder %s18, 7
      %p57 = scmp.ne.s32.totalorder %s52, %s54
      %p58 = scmp.eq.s32.totalorder %s18, 0
      %p59 = por %p57, %p58
      %p60 = scmp.ne.s32.totalorder %s52, %s54
      %p61 = scmp.eq.s32.totalorder %s23, 7
      %p62 = por %p60, %p61
      %p63 = scmp.ne.s32.totalorder %s54, %s55
      %p64 = scmp.eq.s32.totalorder %s23, 0
      %p65 = por %p63, %p64
      %p66 = scmp.ne.s32.totalorder %s54, %s55
      %p67 = scmp.eq.s32.totalorder %s24, 7
      %p68 = por %p66, %p67
      %p70 = scmp.ne.s32.totalorder %s55, %s69
      %p71 = scmp.eq.s32.totalorder %s24, 0
      %p72 = por %p70, %p71
      %s74 = sadd.s32 %s73, 1
      %p77 = scmp.eq.s32.totalorder %s18, 7
      %p78 = scmp.ne.s32.totalorder %s73, %s75
      %p79 = scmp.eq.s32.totalorder %s18, 0
      %p80 = por %p78, %p79
      %p81 = scmp.ne.s32.totalorder %s73, %s75
      %p82 = scmp.eq.s32.totalorder %s23, 7
      %p83 = por %p81, %p82
      %p84 = scmp.ne.s32.totalorder %s75, %s76
      %p85 = scmp.eq.s32.totalorder %s23, 0
      %p86 = por %p84, %p85
      %p87 = scmp.ne.s32.totalorder %s75, %s76
      %p88 = scmp.eq.s32.totalorder %s24, 7
      %p89 = por %p87, %p88
      %p91 = scmp.ne.s32.totalorder %s76, %s90
      %p92 = scmp.eq.s32.totalorder %s24, 0
      %p93 = por %p91, %p92
      %s95 = sadd.s32 %s94, 1
      %p98 = scmp.eq.s32.totalorder %s18, 7
      %p99 = scmp.ne.s32.totalorder %s94, %s96
      %p100 = scmp.eq.s32.totalorder %s18, 0
      %p101 = por %p99, %p100
      %p102 = scmp.ne.s32.totalorder %s94, %s96
      %p103 = scmp.eq.s32.totalorder %s23, 7
      %p104 = por %p102, %p103
      %p105 = scmp.ne.s32.totalorder %s96, %s97
      %p106 = scmp.eq.s32.totalorder %s23, 0
      %p107 = por %p105, %p106
      %p108 = scmp.ne.s32.totalorder %s96, %s97
      %p109 = scmp.eq.s32.totalorder %s24, 7
      %p110 = por %p108, %p109
      %p112 = scmp.ne.s32.totalorder %s97, %s111
      %p113 = scmp.eq.s32.totalorder %s24, 0
      %p114 = por %p112, %p113
      %s116 = sadd.s32 %s115, 1
      %p119 = scmp.eq.s32.totalorder %s18, 7
      %p120 = scmp.ne.s32.totalorder %s115, %s117
      %p121 = scmp.eq.s32.totalorder %s18, 0
      %p122 = por %p120, %p121
      %p123 = scmp.ne.s32.totalorder %s115, %s117
      %p124 = scmp.eq.s32.totalorder %s23, 7
      %p125 = por %p123, %p124
      %p126 = scmp.ne.s32.totalorder %s117, %s118
      %p127 = scmp.eq.s32.totalorder %s23, 0
      %p128 = por %p126, %p127
      %p129 = scmp.ne.s32.totalorder %s117, %s118
      %p130 = scmp.eq.s32.totalorder %s24, 7
      %p131 = por %p129, %p130
      %p133 = scmp.ne.s32.totalorder %s118, %s132
      %p134 = scmp.eq.s32.totalorder %s24, 0
      %p135 = por %p133, %p134
      %s137 = sadd.s32 %s136, 1
      %p140 = scmp.eq.s32.totalorder %s18, 7
      %p141 = scmp.ne.s32.totalorder %s136, %s138
      %p142 = scmp.eq.s32.totalorder %s18, 0
      %p143 = por %p141, %p142
      %p144 = scmp.ne.s32.totalorder %s136, %s138
      %p145 = scmp.eq.s32.totalorder %s23, 7
      %p146 = por %p144, %p145
      %p147 = scmp.ne.s32.totalorder %s138, %s139
      %p148 = scmp.eq.s32.totalorder %s23, 0
      %p149 = por %p147, %p148
      %p150 = scmp.ne.s32.totalorder %s138, %s139
      %p151 = scmp.eq.s32.totalorder %s24, 7
      %p152 = por %p150, %p151
      %p154 = scmp.ne.s32.totalorder %s139, %s153
      %p155 = scmp.eq.s32.totalorder %s24, 0
      %p156 = por %p154, %p155
      %s158 = sadd.s32 %s157, 1
      %p161 = scmp.eq.s32.totalorder %s18, 7
      %p162 = scmp.ne.s32.totalorder %s157, %s159
      %p163 = scmp.eq.s32.totalorder %s18, 0
      %p164 = por %p162, %p163
      %p165 = scmp.ne.s32.totalorder %s157, %s159
      %p166 = scmp.eq.s32.totalorder %s23, 7
      %p167 = por %p165, %p166
      %p168 = scmp.ne.s32.totalorder %s159, %s160
      %p169 = scmp.eq.s32.totalorder %s23, 0
      %p170 = por %p168, %p169
      %p171 = scmp.ne.s32.totalorder %s159, %s160
      %p172 = scmp.eq.s32.totalorder %s24, 7
      %p173 = por %p171, %p172
      %p175 = scmp.ne.s32.totalorder %s160, %s174
      %p176 = scmp.eq.s32.totalorder %s24, 0
      %p177 = por %p175, %p176
      %s179 = sadd.s32 %s178, 1
      %p182 = scmp.eq.s32.totalorder %s18, 7
      %p183 = scmp.ne.s32.totalorder %s178, %s180
      %p184 = scmp.eq.s32.totalorder %s18, 0
      %p185 = por %p183, %p184
      %p186 = scmp.ne.s32.totalorder %s178, %s180
      %p187 = scmp.eq.s32.totalorder %s23, 7
      %p188 = por %p186, %p187
      %p189 = scmp.ne.s32.totalorder %s180, %s181
      %p190 = scmp.eq.s32.totalorder %s23, 0
      %p191 = por %p189, %p190
      %p192 = scmp.ne.s32.totalorder %s180, %s181
      %p193 = scmp.eq.s32.totalorder %s24, 7
      %p194 = por %p192, %p193
      %p196 = scmp.ne.s32.totalorder %s181, %s195
      %p197 = scmp.eq.s32.totalorder %s24, 0
      %p198 = por %p196, %p197
      %s200 = sadd.s32 %s199, 1
      %p203 = scmp.eq.s32.totalorder %s18, 7
      %p204 = scmp.ne.s32.totalorder %s199, %s201
      %p205 = scmp.eq.s32.totalorder %s18, 0
      %p206 = por %p204, %p205
      %p207 = scmp.ne.s32.totalorder %s199, %s201
      %p208 = scmp.eq.s32.totalorder %s23, 7
      %p209 = por %p207, %p208
      %p210 = scmp.ne.s32.totalorder %s201, %s202
      %p211 = scmp.eq.s32.totalorder %s23, 0
      %p212 = por %p210, %p211
      %p213 = scmp.ne.s32.totalorder %s201, %s202
      %p214 = scmp.eq.s32.totalorder %s24, 7
      %p215 = por %p213, %p214
      %p217 = scmp.ne.s32.totalorder %s202, %s216
      %p218 = scmp.eq.s32.totalorder %s24, 0
      %p219 = por %p217, %p218
      %s220 = ssub.s32 %s18, %s25
      %p221 = scmp.eq.s32.totalorder %s220, 0
      %s223 = sadd.s32 %s222, 1
      %s224 = scalar_select %p221, %s222, %s223
      %p227 = pneg %p221
      %p228 = scmp.eq.s32.totalorder %s18, 7
      %p229 = por %p227, %p228
      %p230 = scmp.ne.s32.totalorder %s222, %s225
      %p231 = scmp.eq.s32.totalorder %s18, 0
      %p232 = por %p230, %p231
      %p233 = scmp.ne.s32.totalorder %s222, %s225
      %p234 = scmp.eq.s32.totalorder %s23, 7
      %p235 = por %p233, %p234
      %p236 = scmp.ne.s32.totalorder %s225, %s226
      %p237 = scmp.eq.s32.totalorder %s23, 0
      %p238 = por %p236, %p237
      %p239 = scmp.ne.s32.totalorder %s225, %s226
      %p240 = scmp.eq.s32.totalorder %s24, 7
      %p241 = por %p239, %p240
      %p243 = scmp.ne.s32.totalorder %s226, %s242
      %p244 = scmp.eq.s32.totalorder %s24, 0
      %p245 = por %p243, %p244
      %p246 = scmp.le.s32.totalorder 1, %s18
      %p247 = scmp.lt.s32.totalorder %s18, 9
      %p248 = pnand %p246, %p247
      %p249 = pneg %p248
      // Predicated region
      $region9: #{tpu_custom_call.1} parent=5 // pred_check
        _
      $region10: #{tpu_custom_call.1} parent=5 // pred_check_branch
        %251 = sbr.rel (%p248) target = $region12
      $region11: #{tpu_custom_call.1} parent=5 // pred_region
        %s252 = ssub.s32 %s18, 1
        // Predicated region
        $region13: #{tpu_custom_call.1} parent=11 // pred_check
          %p253 = pneg %p65
        $region14: #{tpu_custom_call.1} parent=11 // pred_check_branch
          %255 = sbr.rel (%p253) target = $region16
        $region15: #{tpu_custom_call.1} parent=11 // pred_region
          _
        $region16: #{tpu_custom_call.1} parent=11 // pred_fallthru
          _
        // Predicated region
        $region17: #{tpu_custom_call.1} parent=11 // pred_check
          %p256 = pneg %p86
        $region18: #{tpu_custom_call.1} parent=11 // pred_check_branch
          %258 = sbr.rel (%p256) target = $region20
        $region19: #{tpu_custom_call.1} parent=11 // pred_region
          _
        $region20: #{tpu_custom_call.1} parent=11 // pred_fallthru
          _
        // Predicated region
        $region21: #{tpu_custom_call.1} parent=11 // pred_check
          %p259 = pneg %p107
        $region22: #{tpu_custom_call.1} parent=11 // pred_check_branch
          %261 = sbr.rel (%p259) target = $region24
        $region23: #{tpu_custom_call.1} parent=11 // pred_region
          _
        $region24: #{tpu_custom_call.1} parent=11 // pred_fallthru
          _
        // Predicated region
        $region25: #{tpu_custom_call.1} parent=11 // pred_check
          %p262 = pneg %p128
        $region26: #{tpu_custom_call.1} parent=11 // pred_check_branch
          %264 = sbr.rel (%p262) target = $region28
        $region27: #{tpu_custom_call.1} parent=11 // pred_region
          _
        $region28: #{tpu_custom_call.1} parent=11 // pred_fallthru
          _
        // Predicated region
        $region29: #{tpu_custom_call.1} parent=11 // pred_check
          %p265 = pneg %p149
        $region30: #{tpu_custom_call.1} parent=11 // pred_check_branch
          %267 = sbr.rel (%p265) target = $region32
        $region31: #{tpu_custom_call.1} parent=11 // pred_region
          _
        $region32: #{tpu_custom_call.1} parent=11 // pred_fallthru
          _
        // Predicated region
        $region33: #{tpu_custom_call.1} parent=11 // pred_check
          %p268 = pneg %p170
        $region34: #{tpu_custom_call.1} parent=11 // pred_check_branch
          %270 = sbr.rel (%p268) target = $region36
        $region35: #{tpu_custom_call.1} parent=11 // pred_region
          _
        $region36: #{tpu_custom_call.1} parent=11 // pred_fallthru
          _
        // Predicated region
        $region37: #{tpu_custom_call.1} parent=11 // pred_check
          %p271 = pneg %p191
        $region38: #{tpu_custom_call.1} parent=11 // pred_check_branch
          %273 = sbr.rel (%p271) target = $region40
        $region39: #{tpu_custom_call.1} parent=11 // pred_region
          _
        $region40: #{tpu_custom_call.1} parent=11 // pred_fallthru
          _
        // Predicated region
        $region41: #{tpu_custom_call.1} parent=11 // pred_check
          %p274 = pneg %p212
        $region42: #{tpu_custom_call.1} parent=11 // pred_check_branch
          %276 = sbr.rel (%p274) target = $region44
        $region43: #{tpu_custom_call.1} parent=11 // pred_region
          _
        $region44: #{tpu_custom_call.1} parent=11 // pred_fallthru
          _
      $region12: #{tpu_custom_call.1} parent=5 // pred_fallthru
        _
      %p277 = scmp.lt.s32.totalorder %s18, 8
      // Predicated region
      $region45: #{tpu_custom_call.1} parent=5 // pred_check
        %p278 = pneg %p277
      $region46: #{tpu_custom_call.1} parent=5 // pred_check_branch
        %280 = sbr.rel (%p278) target = $region48
      $region47: #{tpu_custom_call.1} parent=5 // pred_region
        // Predicated region
        $region49: #{tpu_custom_call.1} parent=47 // pred_check
          %p281 = pneg %p38
        $region50: #{tpu_custom_call.1} parent=47 // pred_check_branch
          %283 = sbr.rel (%p281) target = $region52
        $region51: #{tpu_custom_call.1} parent=47 // pred_region
          %p284 = scmp.lt.s32.totalorder %s18, 7
          %s285 = scalar_select %p284, %s18, 7
          %s286 = smul.addr %s285, 4
          %s287 = scalar_lea.vmem %s0, %s286
        $region52: #{tpu_custom_call.1} parent=47 // pred_fallthru
          _
      $region48: #{tpu_custom_call.1} parent=5 // pred_fallthru
        _
      %p288 = scmp.le.s32.totalorder 1, %s18
      %p289 = scmp.lt.s32.totalorder %s18, 9
      %p290 = pnand %p288, %p289
      %p291 = pneg %p290
      // Predicated region
      $region53: #{tpu_custom_call.1} parent=5 // pred_check
        _
      $region54: #{tpu_custom_call.1} parent=5 // pred_check_branch
        %293 = sbr.rel (%p290) target = $region56
      $region55: #{tpu_custom_call.1} parent=5 // pred_region
        %s294 = ssub.s32 %s18, 1
        %p295 = scmp.lt.s32.totalorder %s23, 7
        %s296 = scalar_select %p295, %s23, 7
        %s297 = smul.addr %s296, 4
        %s298 = scalar_lea.vmem %s0, %s297
        %p299 = pneg %p44
        %p300 = pneg %p41
        %p301 = pneg %p65
        %p302 = pneg %p62
        %p303 = pneg %p86
        %p304 = pneg %p83
        %p305 = pneg %p107
        %p306 = pneg %p104
        %p307 = pneg %p128
        %p308 = pneg %p125
        %p309 = pneg %p149
        %p310 = pneg %p146
        %p311 = pneg %p170
        %p312 = pneg %p167
        %p313 = pneg %p191
        %p314 = pneg %p188
        %p315 = pneg %p212
        %p316 = pneg %p209
        %p317 = pneg %p238
        %p318 = pneg %p235
        %s319 = sand.u32 %s225, 1
        %s320 = scalar_lea.sflag [#allocation4], %s319
        %s321 = sand.u32 %s225, 1
        %s322 = smul.addr %s321, 8
        %s323 = scalar_lea.vmem [#allocation3], %s322
        %p324 = scmp.lt.s32.totalorder %s23, 7
        %s325 = scalar_select %p324, %s23, 7
        %s326 = smul.addr %s325, 4
        %s327 = scalar_lea.vmem %s0, %s326
        %v329 = vld [vmem:[%s1] sm:$0x3]
        %v330 = vld [vmem:[%s327] sm:$0xf]
        %v331 = vld [vmem:[%s2] sm:$0xf]
        %v332 = vld [vmem:[%s3] sm:$0x1]
        %334 = vset.pattern.permute.xlu0 0
        %335 = vperm.xlu0 %334, %v331
        %v336 = vpop.permute.xlu0 %335
        %v339 = vperm.slane %v332, 0
        %v341 = vmul.f32 %v336, %v339
        %vm342 = vcmask 64512
        %v344 = vsel %vm342, %v329, 0
        %vm346 = vcmask 1043456
        %v348 = vsel %vm346, %v330, 0
        %350 = vmatpush.bf16.msra.mxu0 0
        %351 = vmatpush.bf16.msra.mxu0 0
        %352 = vmatpush.bf16.msra.mxu0 0
        %353 = vmatpush.bf16.msra.mxu0 0
        %354 = vmatpush.bf16.msra.mxu0 0
        %355 = vmatpush.bf16.msra.mxu0 0
        %356 = vmatpush.bf16.msra.mxu0 0
        %357 = vmatpush.bf16.msra.mxu0 %v348
        %358 = vmatmul.bf16.gmra.mxu0 %v344
        %v359 = vpop.f32.mrf.mxu0
        %v360 = vadd.f32 %v341, %v359
        %v361 = vpop.f32.mrf.mxu0
        %362 = vdwg.mxu0
        %v363 = vpack.c.bf16 %v360, %v360
        %vm364 = vcmask 812032
        %365 = vst.msk [vmem:[#allocation2] sm:$0x3] %vm364, %v363
        %v366 = vld [vmem:[%s4] sm:$0x3]
        %v367 = vld [vmem:[#allocation2] sm:$0x3]
        %s368 = scalar_lea.vmem %s4, 2
        %v369 = vld [vmem:[%s368] sm:$0x3]
        %371 = vst [vmem:[#allocation1] ss:$4 sm:$0xff] %v367
        %v372 = vld.sshfl [vmem:[#allocation1] sm:$0xff pattern:$0x73625140]
        %374 = vrot.lane.b32.xlu0 %v372, 123
        %v375 = vpop.permute.xlu0 %374
        %vm376 = vcmask 31744
        %v378 = vsel %vm376, %v369, 0
        %vm380 = vcmask 1041408
        %v382 = vsel %vm380, %v375, 0
        %384 = vmatpush.bf16.msra.mxu0 0
        %385 = vmatpush.bf16.msra.mxu0 0
        %386 = vmatpush.bf16.msra.mxu0 0
        %387 = vmatpush.bf16.msra.mxu0 0
        %388 = vmatpush.bf16.msra.mxu0 0
        %389 = vmatpush.bf16.msra.mxu0 0
        %390 = vmatpush.bf16.msra.mxu0 0
        %391 = vmatpush.bf16.msra.mxu0 %v382
        %392 = vmatmul.bf16.gmra.mxu0 %v378
        %v393 = vpop.f32.mrf.mxu0
        %v394 = vadd.f32 0.0, %v393
        %v395 = vpop.f32.mrf.mxu0
        %396 = vdwg.mxu0
        %v398 = vsel %vm376, %v366, 0
        %v400 = vsel %vm380, %v367, 0
        %402 = vmatpush.bf16.msra.mxu0 0
        %403 = vmatpush.bf16.msra.mxu0 0
        %404 = vmatpush.bf16.msra.mxu0 0
        %405 = vmatpush.bf16.msra.mxu0 0
        %406 = vmatpush.bf16.msra.mxu0 0
        %407 = vmatpush.bf16.msra.mxu0 0
        %408 = vmatpush.bf16.msra.mxu0 0
        %409 = vmatpush.bf16.msra.mxu0 %v400
        %410 = vmatmul.bf16.gmra.mxu0 %v398
        %v411 = vpop.f32.mrf.mxu0
        %v412 = vadd.f32 %v394, %v411
        %v413 = vpop.f32.mrf.mxu0
        %414 = vdwg.mxu0
        %s415 = scalar_lea.vmem %s4, 4
        %v416 = vld [vmem:[%s415] sm:$0x3]
        %v417 = vld [vmem:[#allocation2] sm:$0x3]
        %419 = vst [vmem:[#allocation1] ss:$4 sm:$0xff] %v417
        %v420 = vld.sshfl [vmem:[#allocation1] sm:$0xff pattern:$0x73625140]
        %422 = vrot.lane.b32.xlu0 %v420, 127
        %v423 = vpop.permute.xlu0 %422
        %v425 = vsel %vm376, %v416, 0
        %v428 = vsel %vm380, %v423, 0
        %430 = vmatpush.bf16.msra.mxu0 0
        %431 = vmatpush.bf16.msra.mxu0 0
        %432 = vmatpush.bf16.msra.mxu0 0
        %433 = vmatpush.bf16.msra.mxu0 0
        %434 = vmatpush.bf16.msra.mxu0 0
        %435 = vmatpush.bf16.msra.mxu0 0
        %436 = vmatpush.bf16.msra.mxu0 0
        %437 = vmatpush.bf16.msra.mxu0 %v428
        %438 = vmatmul.bf16.gmra.mxu0 %v425
        %v439 = vpop.f32.mrf.mxu0
        %v440 = vadd.f32 0.0, %v439
        %v441 = vpop.f32.mrf.mxu0
        %442 = vdwg.mxu0
        %v443 = vadd.f32 %v412, %v440
        %s444 = scalar_lea.vmem %s4, 6
        %v445 = vld [vmem:[%s444] sm:$0x3]
        %v446 = vld [vmem:[#allocation2] sm:$0x3]
        %448 = vst [vmem:[#allocation1] ss:$4 sm:$0xff] %v446
        %v449 = vld.sshfl [vmem:[#allocation1] sm:$0xff pattern:$0x73625140]
        %451 = vrot.lane.b32.xlu0 %v449, 78
        %v452 = vpop.permute.xlu0 %451
        %v454 = vsel %vm376, %v445, 0
        %v457 = vsel %vm380, %v452, 0
        %459 = vmatpush.bf16.msra.mxu0 0
        %460 = vmatpush.bf16.msra.mxu0 0
        %461 = vmatpush.bf16.msra.mxu0 0
        %462 = vmatpush.bf16.msra.mxu0 0
        %463 = vmatpush.bf16.msra.mxu0 0
        %464 = vmatpush.bf16.msra.mxu0 0
        %465 = vmatpush.bf16.msra.mxu0 0
        %466 = vmatpush.bf16.msra.mxu0 %v457
        %467 = vmatmul.bf16.gmra.mxu0 %v454
        %v468 = vpop.f32.mrf.mxu0
        %v469 = vadd.f32 0.0, %v468
        %v470 = vpop.f32.mrf.mxu0
        %471 = vdwg.mxu0
        %v472 = vadd.f32 %v443, %v469
        %s473 = scalar_lea.vmem %s4, 8
        %v474 = vld [vmem:[%s473] sm:$0x3]
        %v475 = vld [vmem:[#allocation2] sm:$0x3]
        %477 = vst [vmem:[#allocation1] ss:$4 sm:$0xff] %v475
        %v478 = vld.sshfl [vmem:[#allocation1] sm:$0xff pattern:$0x73625140]
        %480 = vrot.lane.b32.xlu0 %v478, 73
        %v481 = vpop.permute.xlu0 %480
        %v483 = vsel %vm376, %v474, 0
        %v486 = vsel %vm380, %v481, 0
        %488 = vmatpush.bf16.msra.mxu0 0
        %489 = vmatpush.bf16.msra.mxu0 0
        %490 = vmatpush.bf16.msra.mxu0 0
        %491 = vmatpush.bf16.msra.mxu0 0
        %492 = vmatpush.bf16.msra.mxu0 0
        %493 = vmatpush.bf16.msra.mxu0 0
        %494 = vmatpush.bf16.msra.mxu0 0
        %495 = vmatpush.bf16.msra.mxu0 %v486
        %496 = vmatmul.bf16.gmra.mxu0 %v483
        %v497 = vpop.f32.mrf.mxu0
        %v498 = vadd.f32 0.0, %v497
        %v499 = vpop.f32.mrf.mxu0
        %500 = vdwg.mxu0
        %v501 = vadd.f32 %v472, %v498
        %s502 = scalar_lea.vmem %s4, 10
        %v503 = vld [vmem:[%s502] sm:$0x3]
        %v504 = vld [vmem:[#allocation2] sm:$0x3]
        %506 = vst [vmem:[#allocation1] ss:$4 sm:$0xff] %v504
        %v507 = vld.sshfl [vmem:[#allocation1] sm:$0xff pattern:$0x73625140]
        %509 = vrot.lane.b32.xlu0 %v507, 77
        %v510 = vpop.permute.xlu0 %509
        %v512 = vsel %vm376, %v503, 0
        %v515 = vsel %vm380, %v510, 0
        %517 = vmatpush.bf16.msra.mxu0 0
        %518 = vmatpush.bf16.msra.mxu0 0
        %519 = vmatpush.bf16.msra.mxu0 0
        %520 = vmatpush.bf16.msra.mxu0 0
        %521 = vmatpush.bf16.msra.mxu0 0
        %522 = vmatpush.bf16.msra.mxu0 0
        %523 = vmatpush.bf16.msra.mxu0 0
        %524 = vmatpush.bf16.msra.mxu0 %v515
        %525 = vmatmul.bf16.gmra.mxu0 %v512
        %v526 = vpop.f32.mrf.mxu0
        %v527 = vadd.f32 0.0, %v526
        %v528 = vpop.f32.mrf.mxu0
        %529 = vdwg.mxu0
        %v530 = vadd.f32 %v501, %v527
        %s531 = scalar_lea.vmem %s4, 12
        %v532 = vld [vmem:[%s531] sm:$0x3]
        %v533 = vld [vmem:[#allocation2] sm:$0x3]
        %535 = vst [vmem:[#allocation1] ss:$4 sm:$0xff] %v533
        %v536 = vld.sshfl [vmem:[#allocation1] sm:$0xff pattern:$0x73625140]
        %538 = vrot.lane.b32.xlu0 %v536, 118
        %v539 = vpop.permute.xlu0 %538
        %v541 = vsel %vm376, %v532, 0
        %v544 = vsel %vm380, %v539, 0
        %546 = vmatpush.bf16.msra.mxu0 0
        %547 = vmatpush.bf16.msra.mxu0 0
        %548 = vmatpush.bf16.msra.mxu0 0
        %549 = vmatpush.bf16.msra.mxu0 0
        %550 = vmatpush.bf16.msra.mxu0 0
        %551 = vmatpush.bf16.msra.mxu0 0
        %552 = vmatpush.bf16.msra.mxu0 0
        %553 = vmatpush.bf16.msra.mxu0 %v544
        %554 = vmatmul.bf16.gmra.mxu0 %v541
        %v555 = vpop.f32.mrf.mxu0
        %v556 = vadd.f32 0.0, %v555
        %v557 = vpop.f32.mrf.mxu0
        %558 = vdwg.mxu0
        %v559 = vadd.f32 %v530, %v556
        %s560 = scalar_lea.vmem %s4, 14
        %v561 = vld [vmem:[%s560] sm:$0x3]
        %v562 = vld [vmem:[#allocation2] sm:$0x3]
        %564 = vst [vmem:[#allocation1] ss:$4 sm:$0xff] %v562
        %v565 = vld.sshfl [vmem:[#allocation1] sm:$0xff pattern:$0x73625140]
        %567 = vrot.lane.b32.xlu0 %v565, 113
        %v568 = vpop.permute.xlu0 %567
        %v570 = vsel %vm376, %v561, 0
        %v573 = vsel %vm380, %v568, 0
        %575 = vmatpush.bf16.msra.mxu0 0
        %576 = vmatpush.bf16.msra.mxu0 0
        %577 = vmatpush.bf16.msra.mxu0 0
        %578 = vmatpush.bf16.msra.mxu0 0
        %579 = vmatpush.bf16.msra.mxu0 0
        %580 = vmatpush.bf16.msra.mxu0 0
        %581 = vmatpush.bf16.msra.mxu0 0
        %582 = vmatpush.bf16.msra.mxu0 %v573
        %583 = vmatmul.bf16.gmra.mxu0 %v570
        %v584 = vpop.f32.mrf.mxu0
        %v585 = vadd.f32 0.0, %v584
        %v586 = vpop.f32.mrf.mxu0
        %587 = vdwg.mxu0
        %v588 = vadd.f32 %v559, %v585
        %s589 = scalar_lea.vmem %s4, 16
        %v590 = vld [vmem:[%s589] sm:$0x3]
        %v591 = vld [vmem:[#allocation2] sm:$0x3]
        %593 = vst [vmem:[#allocation1] ss:$4 sm:$0xff] %v591
        %v594 = vld.sshfl [vmem:[#allocation1] sm:$0xff pattern:$0x73625140]
        %596 = vrot.lane.b32.xlu0 %v594, 117
        %v597 = vpop.permute.xlu0 %596
        %v599 = vsel %vm376, %v590, 0
        %v602 = vsel %vm380, %v597, 0
        %604 = vmatpush.bf16.msra.mxu0 0
        %605 = vmatpush.bf16.msra.mxu0 0
        %606 = vmatpush.bf16.msra.mxu0 0
        %607 = vmatpush.bf16.msra.mxu0 0
        %608 = vmatpush.bf16.msra.mxu0 0
        %609 = vmatpush.bf16.msra.mxu0 0
        %610 = vmatpush.bf16.msra.mxu0 0
        %611 = vmatpush.bf16.msra.mxu0 %v602
        %612 = vmatmul.bf16.gmra.mxu0 %v599
        %v613 = vpop.f32.mrf.mxu0
        %v614 = vadd.f32 0.0, %v613
        %v615 = vpop.f32.mrf.mxu0
        %616 = vdwg.mxu0
        %v617 = vadd.f32 %v588, %v614
        %v618 = vld [vmem:[%s5] sm:$0xf]
        %v619 = vld [vmem:[%s5 + $0x4] sm:$0xf]
        %v620 = vpack.c.bf16 %v617, %v617
        %v621 = vld [vmem:[%s6] sm:$0xff]
        %v622 = vld [vmem:[%s6 + $0x8] sm:$0xff]
        %624 = vset.pattern.permute.xlu0 0
        %625 = vperm.xlu0 %624, %v621
        %v626 = vpop.permute.xlu0 %625
        %629 = vset.pattern.permute.xlu0 0
        %630 = vperm.xlu0 %629, %v622
        %v631 = vpop.permute.xlu0 %630
        %v635 = vunpack.c.l.b16 %v618
        %v636 = vunpack.c.l.b16 %v619
        %v637 = vpack.c.b16 %v636, %v635
        %v639 = vsel %vm376, %v637, 0
        %v642 = vsel %vm380, %v620, 0
        %644 = vmatpush.bf16.msra.mxu0 0
        %645 = vmatpush.bf16.msra.mxu0 0
        %646 = vmatpush.bf16.msra.mxu0 0
        %647 = vmatpush.bf16.msra.mxu0 0
        %648 = vmatpush.bf16.msra.mxu0 0
        %649 = vmatpush.bf16.msra.mxu0 0
        %650 = vmatpush.bf16.msra.mxu0 0
        %651 = vmatpush.bf16.msra.mxu0 %v642
        %652 = vmatmul.bf16.gmra.mxu0 %v639
        %v653 = vpop.f32.mrf.mxu0
        %v654 = vadd.f32 %v626, %v653
        %v655 = vpop.f32.mrf.mxu0
        %v656 = vadd.f32 %v631, %v655
        %657 = vdwg.mxu0
        %v658 = vmax.f32 %v654, 0.0
        %v659 = vmax.f32 %v656, 0.0
        %v660 = vld [vmem:[%s327] sm:$0xf]
        %v661 = vld [vmem:[%s7] sm:$0xf]
        %v662 = vld [vmem:[%s7 + $0x4] sm:$0xf]
        %v663 = vld [vmem:[%s8] sm:$0xff]
        %v664 = vld [vmem:[%s8 + $0x8] sm:$0xff]
        %666 = vset.pattern.permute.xlu0 0
        %667 = vperm.xlu0 %666, %v663
        %v668 = vpop.permute.xlu0 %667
        %671 = vset.pattern.permute.xlu0 0
        %672 = vperm.xlu0 %671, %v664
        %v673 = vpop.permute.xlu0 %672
        %v677 = vunpack.c.l.b16 %v661
        %v678 = vunpack.c.l.b16 %v662
        %v679 = vpack.c.b16 %v678, %v677
        %v681 = vunpack.c.l.b16 %v660
        %v682 = vpack.c.b16 %v681, %v681
        %683 = vrot.lane.b32.xlu0 %v682, 73
        %v684 = vpop.permute.xlu0 %683
        %v686 = vsel %vm342, %v679, 0
        %v689 = vsel %vm346, %v684, 0
        %691 = vmatpush.bf16.msra.mxu0 0
        %692 = vmatpush.bf16.msra.mxu0 0
        %693 = vmatpush.bf16.msra.mxu0 0
        %694 = vmatpush.bf16.msra.mxu0 0
        %695 = vmatpush.bf16.msra.mxu0 0
        %696 = vmatpush.bf16.msra.mxu0 0
        %697 = vmatpush.bf16.msra.mxu0 0
        %698 = vmatpush.bf16.msra.mxu0 %v689
        %699 = vmatmul.bf16.gmra.mxu0 %v686
        %v700 = vpop.f32.mrf.mxu0
        %v701 = vadd.f32 %v668, %v700
        %v702 = vpop.f32.mrf.mxu0
        %v703 = vadd.f32 %v673, %v702
        %704 = vdwg.mxu0
        %v705 = vmax.f32 %v701, 0.0
        %v706 = vmax.f32 %v703, 0.0
        %v707 = vadd.f32 %v658, %v705
        %v708 = vadd.f32 %v659, %v706
        %v709 = vpack.c.bf16 %v707, %v707
        %v710 = vpack.c.bf16 %v708, %v708
        %vm711 = vcmask 322560
        %712 = vst.msk [vmem:[%s323] sm:$0xf] %vm711, %v709
        %713 = vst.msk [vmem:[%s323 + $0x4] sm:$0xf] %vm711, %v710
        %s714 = sand.u32 %s225, 1
        %s715 = scalar_lea.sflag [#allocation4], %s714
        %s716 = sand.u32 %s225, 1
        %s717 = smul.addr %s716, 8
        %s718 = scalar_lea.vmem [#allocation3], %s717
        // Predicated region
        $region57: #{tpu_custom_call.1} parent=55 // pred_check
          %p719 = pneg %p235
        $region58: #{tpu_custom_call.1} parent=55 // pred_check_branch
          %721 = sbr.rel (%p719) target = $region60
        $region59: #{tpu_custom_call.1} parent=55 // pred_region
          %723 = vsyncadd %s715, 0
          %s724 = smul.addr %s23, 2
          %s725 = smul.addr %s724, 4
          %s726 = scalar_lea.hbm %s9, %s725
          %s727 = sshll.u32 %s718, 4
          %s728 = int_to_ptr.vmem [resolvable:$true] %s727
          %s729 = sshll.u32 %s726, 4
          %s730 = int_to_ptr.hbm [resolvable:$true] %s729
          %735 = dma.vmem_to_hbm [thread:$0]  %s728, 128, %s730, %s715, 64, 64, 4
        $region60: #{tpu_custom_call.1} parent=55 // pred_fallthru
          _
      $region56: #{tpu_custom_call.1} parent=5 // pred_fallthru
        _
      %p736 = scmp.le.s32.totalorder 2, %s18
      // Predicated region
      $region61: #{tpu_custom_call.1} parent=5 // pred_check
        %p737 = pneg %p736
      $region62: #{tpu_custom_call.1} parent=5 // pred_check_branch
        %739 = sbr.rel (%p737) target = $region64
      $region63: #{tpu_custom_call.1} parent=5 // pred_region
        %s740 = ssub.s32 %s18, 2
        // Predicated region
        $region65: #{tpu_custom_call.1} parent=63 // pred_check
          %p741 = pneg %p241
        $region66: #{tpu_custom_call.1} parent=63 // pred_check_branch
          %743 = sbr.rel (%p741) target = $region68
        $region67: #{tpu_custom_call.1} parent=63 // pred_region
          %s744 = sand.u32 %s226, 1
          %s745 = scalar_lea.sflag [#allocation4], %s744
          %s746 = sand.u32 %s226, 1
          %s747 = smul.addr %s746, 8
          %s748 = scalar_lea.vmem [#allocation3], %s747
          %750 = dma.done %s745, 128
        $region68: #{tpu_custom_call.1} parent=63 // pred_fallthru
          _
      $region64: #{tpu_custom_call.1} parent=5 // pred_fallthru
        _
    $region6: #{tpu_custom_call.1} parent=1 // loop_footer
      %s22 = sadd.s32 1, %s18
    $region7: #{tpu_custom_call.1} parent=1 // loop_footer_branch
      %17 = sbr.rel target = $region3
    $region8: #{tpu_custom_call.1} parent=1 // loop_exit
      _
    %751 = vsyncpa [#allocation4], 1
    %s752 = scalar_lea.sflag [#allocation4], 1
    %753 = vsyncpa %s752, 1

</llo_original>
